<compile_context>
chip_gen: v6e
topology: v6e:2x2x1
jax: 0.10.0
libtpu: 0.0.40
codegen_flags: <defaults>
</compile_context>

<pallas_src>
import numpy as np
import jax
import jax.numpy as jnp
from jax.experimental import pallas as pl
from jax.experimental.pallas import tpu as pltpu


# ---------------------------------------------------------------------------
# Fused Pallas kernel: [board|dir] tiles in, (padded) Q-values out.
# ---------------------------------------------------------------------------
def _snakenet_kernel(x_ref,
                     w1_ref, b1_ref, w2_ref, b2_ref,
                     whc_ref, bh_ref, wo_ref, bo_ref,
                     o_ref):
    f32 = jnp.float32
    bf16 = jnp.bfloat16

    x = x_ref[...].astype(bf16)                               # (TM, 256)

    # Stage 1 (block-diagonal): conv1-as-dense  +  dir @ W_lin1_dir
    s1 = jnp.dot(x, w1_ref[...], preferred_element_type=f32)  # (TM, 256)
    y1 = jnp.maximum(s1[:, :128] + b1_ref[...], 0.0)          # conv1 + ReLU
    hdir = s1[:, 128:]                                        # lin1 dir-part

    # conv2 as dense matmul + bias + ReLU   -> (TM, 128), lanes >=72 are 0
    y2 = jnp.dot(y1.astype(bf16), w2_ref[...], preferred_element_type=f32)
    y2 = jnp.maximum(y2 + b2_ref[...], 0.0)

    # Linear(117, 32): concat folded into split weights (dir part from stage 1)
    h = (jnp.dot(y2.astype(bf16), whc_ref[...], preferred_element_type=f32)
         + hdir + bh_ref[...])
    h = jnp.maximum(h, 0.0)                                   # (TM, 128)

    # Linear(32, 4), padded to 128 lanes for a lane-dense output store.
    y = jnp.dot(h.astype(bf16), wo_ref[...], preferred_element_type=f32)
    o_ref[...] = (y + bo_ref[...]).astype(o_ref.dtype)


def _round_up(x, m):
    return (x + m - 1) // m * m


def _tile_policy(N):
    """Pick (TM, Np): 8-row-aligned batch tile and padded batch size."""
    N8 = _round_up(max(N, 1), 8)
    if N8 <= 256:                       # small batch: one tile, no fragmenting
        return N8, N8
    # Large (replay-buffer) batches: >=2 tiles so v7x can shard the parallel
    # axis across its 2 TCs; tile cap ~512 rows; minimal round-up waste.
    n_tiles = max(2, pl.cdiv(N8, 512))
    TM = _round_up(pl.cdiv(N8, n_tiles), 8)
    Np = _round_up(N8, TM)
    return TM, Np


def _forward_impl(packed, board, direction):
    """board: (N,1,10,10) NCHW, direction: (N,45) -> (N,4)."""
    N = board.shape[0]
    board2 = board.reshape(N, 100).astype(jnp.float32)
    dir2 = direction.astype(jnp.float32)

    TM, Np = _tile_policy(N)

    # Lane-dense stage-1 input: [board(100) | direction(45) | zeros(111)].
    x = jnp.concatenate([board2, dir2], axis=1)               # (N, 145)
    x = jnp.pad(x, ((0, Np - N), (0, 256 - 145)))             # (Np, 256)

    weight_bytes = 2 * (256 * 256 + 3 * 128 * 128) + 4 * (4 * 128)
    cost = pl.CostEstimate(
        flops=2 * Np * (256 * 256 + 3 * 128 * 128),
        transcendentals=0,
        bytes_accessed=4 * Np * (256 + 128) + weight_bytes,
    )

    const2 = lambda shape: pl.BlockSpec(shape, lambda i: (0, 0))

    out = pl.pallas_call(
        _snakenet_kernel,
        out_shape=jax.ShapeDtypeStruct((Np, 128), jnp.float32),
        grid=(Np // TM,),
        in_specs=[
            pl.BlockSpec((TM, 256), lambda i: (i, 0)),   # [board|dir] tile
            const2((256, 256)),   # stage-1 block-diag weight (bf16)
            const2((1, 128)),     # conv1 bias (f32, padded)
            const2((128, 128)),   # conv2 as dense (bf16)
            const2((1, 128)),     # conv2 bias (f32, padded)
            const2((128, 128)),   # lin1 conv part (bf16)
            const2((1, 128)),     # lin1 bias (f32, padded)
            const2((128, 128)),   # lin2 (bf16, padded to 128 lanes)
            const2((1, 128)),     # lin2 bias (f32, padded)
        ],
        out_specs=pl.BlockSpec((TM, 128), lambda i: (i, 0)),
        compiler_params=pltpu.CompilerParams(
            dimension_semantics=("parallel",)),
        cost_estimate=cost,
    )(x,
      packed["w1"], packed["b1"], packed["w2"], packed["b2"],
      packed["whc"], packed["bh"], packed["wo"], packed["bo"])
    return out[:N, :4]


snakenet_forward = jax.jit(_forward_impl)


# ---------------------------------------------------------------------------
# One-time weight packing (host side, numpy): convs -> dense matmul matrices,
# linears -> transposed + lane-padded, everything matmul-ready in bf16.
# ---------------------------------------------------------------------------
def _conv_as_dense(w, b, hw, stride, k_pad, n_pad):
    """Dense matrix M (k_pad, n_pad) s.t. flat_in @ M == conv output flattened
    in PyTorch channel-major order (c_out, oh, ow); bias broadcast to match."""
    w = np.asarray(w, np.float32)
    b = np.asarray(b, np.float32)
    c_out, c_in, kh, kw = w.shape
    H, W = hw
    oh_n = (H - kh) // stride + 1
    ow_n = (W - kw) // stride + 1
    M = np.zeros((k_pad, n_pad), np.float32)
    bias = np.zeros((1, n_pad), np.float32)
    for co in range(c_out):
        for oh in range(oh_n):
            for ow in range(ow_n):
                col = (co * oh_n + oh) * ow_n + ow
                bias[0, col] = b[co]
                for ci in range(c_in):
                    for ki in range(kh):
                        for kj in range(kw):
                            row = (ci * H + oh * stride + ki) * W + ow * stride + kj
                            M[row, col] = w[co, ci, ki, kj]
    return M, bias


def _pack_params(p):
    # conv1: board(100) -> 64 feats (c,oh,ow order), padded to 128 lanes.
    w1c, b1 = _conv_as_dense(p["conv1_w"], p["conv1_b"], (10, 10), 2, 100, 128)
    # conv2: 64 feats (input width padded to 128) -> 72 feats, padded to 128.
    w2, b2 = _conv_as_dense(p["conv2_w"], p["conv2_b"], (4, 4), 1, 128, 128)

    lin1_w = np.asarray(p["lin1_w"], np.float32)   # (32, 117)
    lin1_b = np.asarray(p["lin1_b"], np.float32)
    lin2_w = np.asarray(p["lin2_w"], np.float32)   # (4, 32)
    lin2_b = np.asarray(p["lin2_b"], np.float32)

    # Stage-1 block-diagonal weight:
    #   [board(100) | dir(45) | 0] (256)  ->  [conv1_pre(128) | dir@Whd(128)]
    w1 = np.zeros((256, 256), np.float32)
    w1[:100, :128] = w1c
    w1[100:145, 128:160] = lin1_w[:, :45].T        # lin1 direction part

    whc = np.zeros((128, 128), np.float32)         # lin1 conv part
    whc[:72, :32] = lin1_w[:, 45:].T               # PyTorch flatten order (c,h,w)
    bh = np.zeros((1, 128), np.float32)
    bh[0, :32] = lin1_b

    wo = np.zeros((128, 128), np.float32)          # lin2, lane-padded output
    wo[:32, :4] = lin2_w.T
    bo = np.zeros((1, 128), np.float32)
    bo[0, :4] = lin2_b

    bf16, f32 = jnp.bfloat16, jnp.float32
    return dict(
        w1=jnp.asarray(w1, bf16), b1=jnp.asarray(b1, f32),
        w2=jnp.asarray(w2, bf16), b2=jnp.asarray(b2, f32),
        whc=jnp.asarray(whc, bf16), bh=jnp.asarray(bh, f32),
        wo=jnp.asarray(wo, bf16), bo=jnp.asarray(bo, f32))


# ---------------------------------------------------------------------------
# Parameters (PyTorch-default-style init) + online/target wrapper.
# ---------------------------------------------------------------------------
def init_params(key):
    ks = jax.random.split(key, 8)

    def u(k, shape, fan_in):
        bound = 1.0 / float(fan_in) ** 0.5
        return jax.random.uniform(k, shape, jnp.float32, -bound, bound)

    return dict(
        conv1_w=u(ks[0], (4, 1, 4, 4), 1 * 4 * 4),   # Conv2d(1->4, k=4, s=2)
        conv1_b=u(ks[1], (4,), 1 * 4 * 4),
        conv2_w=u(ks[2], (8, 4, 2, 2), 4 * 2 * 2),   # Conv2d(4->8, k=2, s=1)
        conv2_b=u(ks[3], (8,), 4 * 2 * 2),
        lin1_w=u(ks[4], (32, 117), 117),             # Linear(117, 32), (out,in)
        lin1_b=u(ks[5], (32,), 117),
        lin2_w=u(ks[6], (4, 32), 32),                # Linear(32, 4)
        lin2_b=u(ks[7], (4,), 32),
    )


class SnakeNetPallas:
    """Mirrors SnakeNet: online + target (deep-copied, identical) params,
    each pre-packed once into matmul-ready, lane-padded bf16 layout."""

    def __init__(self, key):
        self.online = init_params(key)
        self.target = jax.tree_util.tree_map(jnp.array, self.online)  # deep copy
        self._packed = {
            "online": _pack_params(self.online),
            "target": _pack_params(self.target),
        }

    def __call__(self, state, model):
        board, direction = state
        if model in self._packed:
            return snakenet_forward(self._packed[model], board, direction)
        raise ValueError(model)


# ---------------------------------------------------------------------------
# Plain-XLA f32 reference (in-script correctness cross-check only).
# ---------------------------------------------------------------------------
def _reference_forward(params, board, direction):
    x = jax.lax.conv_general_dilated(
        board.astype(jnp.float32), params["conv1_w"],
        window_strides=(2, 2), padding="VALID",
        dimension_numbers=("NCHW", "OIHW", "NCHW"))
    x = jax.nn.relu(x + params["conv1_b"][None, :, None, None])
    x = jax.lax.conv_general_dilated(
        x, params["conv2_w"], window_strides=(1, 1), padding="VALID",
        dimension_numbers=("NCHW", "OIHW", "NCHW"))
    x = jax.nn.relu(x + params["conv2_b"][None, :, None, None])
    conv_out = x.reshape(x.shape[0], -1)
    X = jnp.concatenate([direction.astype(jnp.float32), conv_out], axis=1)
    h = jax.nn.relu(X @ params["lin1_w"].T + params["lin1_b"])
    return h @ params["lin2_w"].T + params["lin2_b"]


# ---------------------------------------------------------------------------
if __name__ == "__main__":
    key = jax.random.PRNGKey(0)
    k_param, k_board, k_dir = jax.random.split(key, 3)

    net = SnakeNetPallas(k_param)

    N = 2
    board = jax.random.normal(k_board, (N, 1, 10, 10), jnp.float32)   # NCHW
    direction = jax.random.normal(k_dir, (N, 45), jnp.float32)        # 45 + 72 = 117

    out_online = net((board, direction), "online")
    out_target = net((board, direction), "target")
    jax.block_until_ready(out_online)
    jax.block_until_ready(out_target)

    assert out_online.shape == (N, 4) and out_target.shape == (N, 4)

    # Cross-check the fused bf16 kernel against the plain-XLA f32 reference
    # (guards conv-as-dense packing, flatten order, stage-1 fusion, bf16 error).
    ref = _reference_forward(net.online, board, direction)
    assert jnp.allclose(out_online, ref, atol=5e-2, rtol=5e-2), \
        float(jnp.max(jnp.abs(out_online - ref)))
    assert jnp.allclose(out_online, out_target, atol=1e-6)

    print("KERNEL_OK")
</pallas_src>

<mosaic_0001>
module attributes {stable_mosaic.version = 11 : i64} {
  func.func @_snakenet_kernel(%arg0: i32, %arg1: memref<8x256xf32, #tpu.memory_space<vmem>>, %arg2: memref<256x256xbf16, #tpu.memory_space<vmem>>, %arg3: memref<1x128xf32, #tpu.memory_space<vmem>>, %arg4: memref<128x128xbf16, #tpu.memory_space<vmem>>, %arg5: memref<1x128xf32, #tpu.memory_space<vmem>>, %arg6: memref<128x128xbf16, #tpu.memory_space<vmem>>, %arg7: memref<1x128xf32, #tpu.memory_space<vmem>>, %arg8: memref<128x128xbf16, #tpu.memory_space<vmem>>, %arg9: memref<1x128xf32, #tpu.memory_space<vmem>>, %arg10: memref<8x128xf32, #tpu.memory_space<vmem>>) attributes {dimension_semantics = [#tpu.dimension_semantics<parallel>], iteration_bounds = array<i64: 1>, scalar_prefetch = 0 : i64, scratch_operands = 0 : i64, tpu.core_type = #tpu.core_type<tc>, window_params = [{transform_indices = @transform_0, window_bounds = array<i64: 8, 256>}, {pipeline_mode = #tpu.pipeline_mode<synchronous>, transform_indices = @transform_1, window_bounds = array<i64: 256, 256>}, {pipeline_mode = #tpu.pipeline_mode<synchronous>, transform_indices = @transform_2, window_bounds = array<i64: 1, 128>}, {pipeline_mode = #tpu.pipeline_mode<synchronous>, transform_indices = @transform_3, window_bounds = array<i64: 128, 128>}, {pipeline_mode = #tpu.pipeline_mode<synchronous>, transform_indices = @transform_4, window_bounds = array<i64: 1, 128>}, {pipeline_mode = #tpu.pipeline_mode<synchronous>, transform_indices = @transform_5, window_bounds = array<i64: 128, 128>}, {pipeline_mode = #tpu.pipeline_mode<synchronous>, transform_indices = @transform_6, window_bounds = array<i64: 1, 128>}, {pipeline_mode = #tpu.pipeline_mode<synchronous>, transform_indices = @transform_7, window_bounds = array<i64: 128, 128>}, {pipeline_mode = #tpu.pipeline_mode<synchronous>, transform_indices = @transform_8, window_bounds = array<i64: 1, 128>}, {transform_indices = @transform_9, window_bounds = array<i64: 8, 128>}]} {
    %c0 = arith.constant 0 : index
    %c0_0 = arith.constant 0 : index
    %0 = vector.load %arg1[%c0, %c0_0] : memref<8x256xf32, #tpu.memory_space<vmem>>, vector<8x256xf32>
    %1 = arith.truncf %0 : vector<8x256xf32> to vector<8x256xbf16>
    %c0_1 = arith.constant 0 : index
    %c0_2 = arith.constant 0 : index
    %2 = vector.load %arg2[%c0_1, %c0_2] : memref<256x256xbf16, #tpu.memory_space<vmem>>, vector<256x256xbf16>
    %cst = arith.constant dense<0.000000e+00> : vector<8x256xf32>
    %3 = tpu.matmul %1, %2, %cst {dimension_numbers = #tpu.dot_dimension_numbers<[1], [0], [0], [1], [0, 0, 1, 1], [], []>} : vector<8x256xbf16>, vector<256x256xbf16>, vector<8x256xf32> -> vector<8x256xf32>
    %4 = vector.extract_strided_slice %3 {offsets = [0, 0], sizes = [8, 128], strides = [1, 1]} : vector<8x256xf32> to vector<8x128xf32>
    %c0_3 = arith.constant 0 : index
    %c0_4 = arith.constant 0 : index
    %5 = vector.load %arg3[%c0_3, %c0_4] : memref<1x128xf32, #tpu.memory_space<vmem>>, vector<1x128xf32>
    %6 = vector.broadcast %5 : vector<1x128xf32> to vector<8x128xf32>
    %7 = arith.addf %4, %6 : vector<8x128xf32>
    %cst_5 = arith.constant 0.000000e+00 : f32
    %8 = vector.broadcast %cst_5 : f32 to vector<8x128xf32>
    %9 = arith.maximumf %7, %8 : vector<8x128xf32>
    %10 = vector.extract_strided_slice %3 {offsets = [0, 128], sizes = [8, 128], strides = [1, 1]} : vector<8x256xf32> to vector<8x128xf32>
    %11 = arith.truncf %9 : vector<8x128xf32> to vector<8x128xbf16>
    %c0_6 = arith.constant 0 : index
    %c0_7 = arith.constant 0 : index
    %12 = vector.load %arg4[%c0_6, %c0_7] : memref<128x128xbf16, #tpu.memory_space<vmem>>, vector<128x128xbf16>
    %cst_8 = arith.constant dense<0.000000e+00> : vector<8x128xf32>
    %13 = tpu.matmul %11, %12, %cst_8 {dimension_numbers = #tpu.dot_dimension_numbers<[1], [0], [0], [1], [0, 0, 1, 1], [], []>} : vector<8x128xbf16>, vector<128x128xbf16>, vector<8x128xf32> -> vector<8x128xf32>
    %c0_9 = arith.constant 0 : index
    %c0_10 = arith.constant 0 : index
    %14 = vector.load %arg5[%c0_9, %c0_10] : memref<1x128xf32, #tpu.memory_space<vmem>>, vector<1x128xf32>
    %15 = vector.broadcast %14 : vector<1x128xf32> to vector<8x128xf32>
    %16 = arith.addf %13, %15 : vector<8x128xf32>
    %cst_11 = arith.constant 0.000000e+00 : f32
    %17 = vector.broadcast %cst_11 : f32 to vector<8x128xf32>
    %18 = arith.maximumf %16, %17 : vector<8x128xf32>
    %19 = arith.truncf %18 : vector<8x128xf32> to vector<8x128xbf16>
    %c0_12 = arith.constant 0 : index
    %c0_13 = arith.constant 0 : index
    %20 = vector.load %arg6[%c0_12, %c0_13] : memref<128x128xbf16, #tpu.memory_space<vmem>>, vector<128x128xbf16>
    %cst_14 = arith.constant dense<0.000000e+00> : vector<8x128xf32>
    %21 = tpu.matmul %19, %20, %cst_14 {dimension_numbers = #tpu.dot_dimension_numbers<[1], [0], [0], [1], [0, 0, 1, 1], [], []>} : vector<8x128xbf16>, vector<128x128xbf16>, vector<8x128xf32> -> vector<8x128xf32>
    %22 = arith.addf %21, %10 : vector<8x128xf32>
    %c0_15 = arith.constant 0 : index
    %c0_16 = arith.constant 0 : index
    %23 = vector.load %arg7[%c0_15, %c0_16] : memref<1x128xf32, #tpu.memory_space<vmem>>, vector<1x128xf32>
    %24 = vector.broadcast %23 : vector<1x128xf32> to vector<8x128xf32>
    %25 = arith.addf %22, %24 : vector<8x128xf32>
    %cst_17 = arith.constant 0.000000e+00 : f32
    %26 = vector.broadcast %cst_17 : f32 to vector<8x128xf32>
    %27 = arith.maximumf %25, %26 : vector<8x128xf32>
    %28 = arith.truncf %27 : vector<8x128xf32> to vector<8x128xbf16>
    %c0_18 = arith.constant 0 : index
    %c0_19 = arith.constant 0 : index
    %29 = vector.load %arg8[%c0_18, %c0_19] : memref<128x128xbf16, #tpu.memory_space<vmem>>, vector<128x128xbf16>
    %cst_20 = arith.constant dense<0.000000e+00> : vector<8x128xf32>
    %30 = tpu.matmul %28, %29, %cst_20 {dimension_numbers = #tpu.dot_dimension_numbers<[1], [0], [0], [1], [0, 0, 1, 1], [], []>} : vector<8x128xbf16>, vector<128x128xbf16>, vector<8x128xf32> -> vector<8x128xf32>
    %c0_21 = arith.constant 0 : index
    %c0_22 = arith.constant 0 : index
    %31 = vector.load %arg9[%c0_21, %c0_22] : memref<1x128xf32, #tpu.memory_space<vmem>>, vector<1x128xf32>
    %32 = vector.broadcast %31 : vector<1x128xf32> to vector<8x128xf32>
    %33 = arith.addf %30, %32 : vector<8x128xf32>
    %c0_23 = arith.constant 0 : index
    %c0_24 = arith.constant 0 : index
    %34 = vector.load %arg10[%c0_23, %c0_24] : memref<8x128xf32, #tpu.memory_space<vmem>>, vector<8x128xf32>
    tpu.vector_store %arg10[%c0_23, %c0_24], %33 {strides = array<i32>} : memref<8x128xf32, #tpu.memory_space<vmem>>, vector<8x128xf32>,
    return
  }
  func.func @transform_0(%arg0: i32) -> (i32, i32) {
    %c0_i32 = arith.constant 0 : i32
    %c0_i32_0 = arith.constant 0 : i32
    return %arg0, %c0_i32 : i32, i32
  }
  func.func @transform_1(%arg0: i32) -> (i32, i32) {
    %c0_i32 = arith.constant 0 : i32
    %c0_i32_0 = arith.constant 0 : i32
    %c0_i32_1 = arith.constant 0 : i32
    return %c0_i32, %c0_i32_0 : i32, i32
  }
  func.func @transform_2(%arg0: i32) -> (i32, i32) {
    %c0_i32 = arith.constant 0 : i32
    %c0_i32_0 = arith.constant 0 : i32
    %c0_i32_1 = arith.constant 0 : i32
    return %c0_i32, %c0_i32_0 : i32, i32
  }
  func.func @transform_3(%arg0: i32) -> (i32, i32) {
    %c0_i32 = arith.constant 0 : i32
    %c0_i32_0 = arith.constant 0 : i32
    %c0_i32_1 = arith.constant 0 : i32
    return %c0_i32, %c0_i32_0 : i32, i32
  }
  func.func @transform_4(%arg0: i32) -> (i32, i32) {
    %c0_i32 = arith.constant 0 : i32
    %c0_i32_0 = arith.constant 0 : i32
    %c0_i32_1 = arith.constant 0 : i32
    return %c0_i32, %c0_i32_0 : i32, i32
  }
  func.func @transform_5(%arg0: i32) -> (i32, i32) {
    %c0_i32 = arith.constant 0 : i32
    %c0_i32_0 = arith.constant 0 : i32
    %c0_i32_1 = arith.constant 0 : i32
    return %c0_i32, %c0_i32_0 : i32, i32
  }
  func.func @transform_6(%arg0: i32) -> (i32, i32) {
    %c0_i32 = arith.constant 0 : i32
    %c0_i32_0 = arith.constant 0 : i32
    %c0_i32_1 = arith.constant 0 : i32
    return %c0_i32, %c0_i32_0 : i32, i32
  }
  func.func @transform_7(%arg0: i32) -> (i32, i32) {
    %c0_i32 = arith.constant 0 : i32
    %c0_i32_0 = arith.constant 0 : i32
    %c0_i32_1 = arith.constant 0 : i32
    return %c0_i32, %c0_i32_0 : i32, i32
  }
  func.func @transform_8(%arg0: i32) -> (i32, i32) {
    %c0_i32 = arith.constant 0 : i32
    %c0_i32_0 = arith.constant 0 : i32
    %c0_i32_1 = arith.constant 0 : i32
    return %c0_i32, %c0_i32_0 : i32, i32
  }
  func.func @transform_9(%arg0: i32) -> (i32, i32) {
    %c0_i32 = arith.constant 0 : i32
    %c0_i32_0 = arith.constant 0 : i32
    return %arg0, %c0_i32 : i32, i32
  }
}

</mosaic_0001>

<llo_original>
// kernel: _forward_impl.1
$region0: #{_forward_impl.1}
  #allocation0 [shape = 'u32[]', space=smem, size = 0x4, offset = 0x4, fixed_abs, tag = 'smem constant byte address 0x4 - core index']
  #allocation1 [shape = 'u32[144,128]{1,0:T(1,128)}', space=vmem, size = 0x12000, scoped, tag = 'internal scratch']
  %s0 = inlined_call_operand.vmem [shape: f32[8,256], index: 0, kind: input, shape index: {}]
  %s1 = inlined_call_operand.hbm [shape: bf16[256,256], index: 1, kind: input, shape index: {}]
  %s2 = inlined_call_operand.vmem [shape: f32[1,128], index: 2, kind: input, shape index: {}]
  %s3 = inlined_call_operand.vmem [shape: bf16[128,128], index: 3, kind: input, shape index: {}]
  %s4 = inlined_call_operand.vmem [shape: f32[1,128], index: 4, kind: input, shape index: {}]
  %s5 = inlined_call_operand.hbm [shape: bf16[128,128], index: 5, kind: input, shape index: {}]
  %s6 = inlined_call_operand.vmem [shape: f32[1,128], index: 6, kind: input, shape index: {}]
  %s7 = inlined_call_operand.hbm [shape: bf16[128,128], index: 7, kind: input, shape index: {}]
  %s8 = inlined_call_operand.vmem [shape: f32[1,128], index: 8, kind: input, shape index: {}]
  %s9 = inlined_call_operand.vmem [shape: f32[8,128], index: 9, kind: output, shape index: {}]
  %s10 = sld [smem:[#allocation0]]
  $region58: #{_forward_impl.1} parent=0
    _
  %s12 = ssub.s32 1, %s10
  %s13 = scalar_select 0, %s12, %s10
  $region1: #{_forward_impl.1} parent=0
    #allocation2 [shape = 'u8[131072]{0}', space=vmem, size = 0x20000, scoped, tag = 'input window, operand 1, single buffered']
    #allocation3 [shape = 's32[1]{0}', space=sflag, size = 0x4, scoped, tag = 'scoped memory for _forward_impl.1']
    #allocation4 [shape = 'u8[32768]{0}', space=vmem, size = 0x8000, scoped, tag = 'input window, operand 5, single buffered']
    #allocation5 [shape = 's32[1]{0}', space=sflag, size = 0x4, scoped, tag = 'scoped memory for _forward_impl.1']
    #allocation6 [shape = 'u8[32768]{0}', space=vmem, size = 0x8000, scoped, tag = 'input window, operand 7, single buffered']
    %14 = vsyncpa [#allocation3], 0
    %15 = vsyncpa [#allocation5], 0
    // Predicated region
    $region2: #{_forward_impl.1} parent=1 // pred_check
      _
    $region3: #{_forward_impl.1} parent=1 // pred_check_branch
      %17 = sbr.rel (0) target = $region5
    $region4: #{_forward_impl.1} parent=1 // pred_region
      _
    $region5: #{_forward_impl.1} parent=1 // pred_fallthru
      _
    // Predicated region
    $region6: #{_forward_impl.1} parent=1 // pred_check
      _
    $region7: #{_forward_impl.1} parent=1 // pred_check_branch
      %19 = sbr.rel (0) target = $region9
    $region8: #{_forward_impl.1} parent=1 // pred_region
      %s21 = ssub.s32 4096, 4096
      %22 = vsyncadd [#allocation3], %s21
      %s23 = sshll.u32 [#allocation2], 4
      %s24 = int_to_ptr.vmem [resolvable:$true] %s23
      %29 = dma.hbm_to_vmem [thread:$0]  %s1, 4096, %s24, [#allocation3], 128, 128, 8
    $region9: #{_forward_impl.1} parent=1 // pred_fallthru
      _
    // Predicated region
    $region10: #{_forward_impl.1} parent=1 // pred_check
      _
    $region11: #{_forward_impl.1} parent=1 // pred_check_branch
      %31 = sbr.rel (0) target = $region13
    $region12: #{_forward_impl.1} parent=1 // pred_region
      _
    $region13: #{_forward_impl.1} parent=1 // pred_fallthru
      _
    // Predicated region
    $region14: #{_forward_impl.1} parent=1 // pred_check
      _
    $region15: #{_forward_impl.1} parent=1 // pred_check_branch
      %33 = sbr.rel (0) target = $region17
    $region16: #{_forward_impl.1} parent=1 // pred_region
      _
    $region17: #{_forward_impl.1} parent=1 // pred_fallthru
      _
    // Predicated region
    $region18: #{_forward_impl.1} parent=1 // pred_check
      _
    $region19: #{_forward_impl.1} parent=1 // pred_check_branch
      %35 = sbr.rel (0) target = $region21
    $region20: #{_forward_impl.1} parent=1 // pred_region
      _
    $region21: #{_forward_impl.1} parent=1 // pred_fallthru
      _
    // Predicated region
    $region22: #{_forward_impl.1} parent=1 // pred_check
      _
    $region23: #{_forward_impl.1} parent=1 // pred_check_branch
      %37 = sbr.rel (0) target = $region25
    $region24: #{_forward_impl.1} parent=1 // pred_region
      %s39 = ssub.s32 1024, 1024
      %40 = vsyncadd [#allocation5], %s39
      %s41 = sshll.u32 [#allocation4], 4
      %s42 = int_to_ptr.vmem [resolvable:$true] %s41
      %47 = dma.hbm_to_vmem [thread:$0]  %s5, 1024, %s42, [#allocation5], 64, 64, 4
    $region25: #{_forward_impl.1} parent=1 // pred_fallthru
      _
    // Predicated region
    $region26: #{_forward_impl.1} parent=1 // pred_check
      _
    $region27: #{_forward_impl.1} parent=1 // pred_check_branch
      %49 = sbr.rel (0) target = $region29
    $region28: #{_forward_impl.1} parent=1 // pred_region
      _
    $region29: #{_forward_impl.1} parent=1 // pred_fallthru
      _
    // Predicated region
    $region30: #{_forward_impl.1} parent=1 // pred_check
      _
    $region31: #{_forward_impl.1} parent=1 // pred_check_branch
      %51 = sbr.rel (0) target = $region33
    $region32: #{_forward_impl.1} parent=1 // pred_region
      %s53 = ssub.s32 1024, 1024
      %54 = vsyncadd [#allocation5], %s53
      %s55 = sshll.u32 [#allocation6], 4
      %s56 = int_to_ptr.vmem [resolvable:$true] %s55
      %61 = dma.hbm_to_vmem [thread:$0]  %s7, 1024, %s56, [#allocation5], 64, 64, 4
    $region33: #{_forward_impl.1} parent=1 // pred_fallthru
      _
    // Predicated region
    $region34: #{_forward_impl.1} parent=1 // pred_check
      _
    $region35: #{_forward_impl.1} parent=1 // pred_check_branch
      %63 = sbr.rel (0) target = $region37
    $region36: #{_forward_impl.1} parent=1 // pred_region
      _
    $region37: #{_forward_impl.1} parent=1 // pred_fallthru
      _
    // Predicated region
    $region38: #{_forward_impl.1} parent=1 // pred_check
      _
    $region39: #{_forward_impl.1} parent=1 // pred_check_branch
      %65 = sbr.rel (0) target = $region41
    $region40: #{_forward_impl.1} parent=1 // pred_region
      %66 = dma.done [#allocation3], 4096
    $region41: #{_forward_impl.1} parent=1 // pred_fallthru
      _
    // Predicated region
    $region42: #{_forward_impl.1} parent=1 // pred_check
      _
    $region43: #{_forward_impl.1} parent=1 // pred_check_branch
      %68 = sbr.rel (0) target = $region45
    $region44: #{_forward_impl.1} parent=1 // pred_region
      %69 = dma.done [#allocation5], 1024
    $region45: #{_forward_impl.1} parent=1 // pred_fallthru
      _
    // Predicated region
    $region46: #{_forward_impl.1} parent=1 // pred_check
      _
    $region47: #{_forward_impl.1} parent=1 // pred_check_branch
      %71 = sbr.rel (0) target = $region49
    $region48: #{_forward_impl.1} parent=1 // pred_region
      %72 = dma.done [#allocation5], 1024
    $region49: #{_forward_impl.1} parent=1 // pred_fallthru
      _
    %v74 = vld [vmem:[%s0] sm:$0xff]
    %v75 = vld [vmem:[%s0 + $0x8] sm:$0xff]
    %v76 = vpack.c.bf16 %v74, %v74
    %v77 = vpack.c.bf16 %v75, %v75
    %v78 = vld [vmem:[#allocation2] sm:$0xff]
    %v79 = vld [vmem:[#allocation2 + $0x8] sm:$0xff]
    %v80 = vld [vmem:[#allocation2 + $0x10] sm:$0xff]
    %v81 = vld [vmem:[#allocation2 + $0x18] sm:$0xff]
    %v82 = vld [vmem:[#allocation2 + $0x20] sm:$0xff]
    %v83 = vld [vmem:[#allocation2 + $0x28] sm:$0xff]
    %v84 = vld [vmem:[#allocation2 + $0x30] sm:$0xff]
    %v85 = vld [vmem:[#allocation2 + $0x38] sm:$0xff]
    %v86 = vld [vmem:[#allocation2 + $0x40] sm:$0xff]
    %v87 = vld [vmem:[#allocation2 + $0x48] sm:$0xff]
    %v88 = vld [vmem:[#allocation2 + $0x50] sm:$0xff]
    %v89 = vld [vmem:[#allocation2 + $0x58] sm:$0xff]
    %v90 = vld [vmem:[#allocation2 + $0x60] sm:$0xff]
    %v91 = vld [vmem:[#allocation2 + $0x68] sm:$0xff]
    %v92 = vld [vmem:[#allocation2 + $0x70] sm:$0xff]
    %v93 = vld [vmem:[#allocation2 + $0x78] sm:$0xff]
    %v94 = vld [vmem:[#allocation2 + $0x80] sm:$0xff]
    %v95 = vld [vmem:[#allocation2 + $0x88] sm:$0xff]
    %v96 = vld [vmem:[#allocation2 + $0x90] sm:$0xff]
    %v97 = vld [vmem:[#allocation2 + $0x98] sm:$0xff]
    %v98 = vld [vmem:[#allocation2 + $0xa0] sm:$0xff]
    %v99 = vld [vmem:[#allocation2 + $0xa8] sm:$0xff]
    %v100 = vld [vmem:[#allocation2 + $0xb0] sm:$0xff]
    %v101 = vld [vmem:[#allocation2 + $0xb8] sm:$0xff]
    %v102 = vld [vmem:[#allocation2 + $0xc0] sm:$0xff]
    %v103 = vld [vmem:[#allocation2 + $0xc8] sm:$0xff]
    %v104 = vld [vmem:[#allocation2 + $0xd0] sm:$0xff]
    %v105 = vld [vmem:[#allocation2 + $0xd8] sm:$0xff]
    %v106 = vld [vmem:[#allocation2 + $0xe0] sm:$0xff]
    %v107 = vld [vmem:[#allocation2 + $0xe8] sm:$0xff]
    %v108 = vld [vmem:[#allocation2 + $0xf0] sm:$0xff]
    %v109 = vld [vmem:[#allocation2 + $0xf8] sm:$0xff]
    %v142 = vunpack.c.l.b16 %v78
    %v143 = vunpack.c.h.b16 %v78
    %v144 = vunpack.c.l.b16 %v79
    %v145 = vunpack.c.h.b16 %v79
    %v146 = vunpack.c.l.b16 %v80
    %v147 = vunpack.c.h.b16 %v80
    %v148 = vunpack.c.l.b16 %v81
    %v149 = vunpack.c.h.b16 %v81
    %v150 = vunpack.c.l.b16 %v82
    %v151 = vunpack.c.h.b16 %v82
    %v152 = vunpack.c.l.b16 %v83
    %v153 = vunpack.c.h.b16 %v83
    %v154 = vunpack.c.l.b16 %v84
    %v155 = vunpack.c.h.b16 %v84
    %v156 = vunpack.c.l.b16 %v85
    %v157 = vunpack.c.h.b16 %v85
    %v158 = vunpack.c.l.b16 %v86
    %v159 = vunpack.c.h.b16 %v86
    %v160 = vunpack.c.l.b16 %v87
    %v161 = vunpack.c.h.b16 %v87
    %v162 = vunpack.c.l.b16 %v88
    %v163 = vunpack.c.h.b16 %v88
    %v164 = vunpack.c.l.b16 %v89
    %v165 = vunpack.c.h.b16 %v89
    %v166 = vunpack.c.l.b16 %v90
    %v167 = vunpack.c.h.b16 %v90
    %v168 = vunpack.c.l.b16 %v91
    %v169 = vunpack.c.h.b16 %v91
    %v170 = vunpack.c.l.b16 %v92
    %v171 = vunpack.c.h.b16 %v92
    %v172 = vunpack.c.l.b16 %v93
    %v173 = vunpack.c.h.b16 %v93
    %v174 = vunpack.c.l.b16 %v94
    %v175 = vunpack.c.h.b16 %v94
    %v176 = vunpack.c.l.b16 %v95
    %v177 = vunpack.c.h.b16 %v95
    %v178 = vunpack.c.l.b16 %v96
    %v179 = vunpack.c.h.b16 %v96
    %v180 = vunpack.c.l.b16 %v97
    %v181 = vunpack.c.h.b16 %v97
    %v182 = vunpack.c.l.b16 %v98
    %v183 = vunpack.c.h.b16 %v98
    %v184 = vunpack.c.l.b16 %v99
    %v185 = vunpack.c.h.b16 %v99
    %v186 = vunpack.c.l.b16 %v100
    %v187 = vunpack.c.h.b16 %v100
    %v188 = vunpack.c.l.b16 %v101
    %v189 = vunpack.c.h.b16 %v101
    %v190 = vunpack.c.l.b16 %v102
    %v191 = vunpack.c.h.b16 %v102
    %v192 = vunpack.c.l.b16 %v103
    %v193 = vunpack.c.h.b16 %v103
    %v194 = vunpack.c.l.b16 %v104
    %v195 = vunpack.c.h.b16 %v104
    %v196 = vunpack.c.l.b16 %v105
    %v197 = vunpack.c.h.b16 %v105
    %v198 = vunpack.c.l.b16 %v106
    %v199 = vunpack.c.h.b16 %v106
    %v200 = vunpack.c.l.b16 %v107
    %v201 = vunpack.c.h.b16 %v107
    %v202 = vunpack.c.l.b16 %v108
    %v203 = vunpack.c.h.b16 %v108
    %v204 = vunpack.c.l.b16 %v109
    %v205 = vunpack.c.h.b16 %v109
    %v206 = vpack.c.b16 %v144, %v142
    %v207 = vpack.c.b16 %v145, %v143
    %v208 = vpack.c.b16 %v148, %v146
    %v209 = vpack.c.b16 %v149, %v147
    %v210 = vpack.c.b16 %v152, %v150
    %v211 = vpack.c.b16 %v153, %v151
    %v212 = vpack.c.b16 %v156, %v154
    %v213 = vpack.c.b16 %v157, %v155
    %v214 = vpack.c.b16 %v160, %v158
    %v215 = vpack.c.b16 %v161, %v159
    %v216 = vpack.c.b16 %v164, %v162
    %v217 = vpack.c.b16 %v165, %v163
    %v218 = vpack.c.b16 %v168, %v166
    %v219 = vpack.c.b16 %v169, %v167
    %v220 = vpack.c.b16 %v172, %v170
    %v221 = vpack.c.b16 %v173, %v171
    %v222 = vpack.c.b16 %v176, %v174
    %v223 = vpack.c.b16 %v177, %v175
    %v224 = vpack.c.b16 %v180, %v178
    %v225 = vpack.c.b16 %v181, %v179
    %v226 = vpack.c.b16 %v184, %v182
    %v227 = vpack.c.b16 %v185, %v183
    %v228 = vpack.c.b16 %v188, %v186
    %v229 = vpack.c.b16 %v189, %v187
    %v230 = vpack.c.b16 %v192, %v190
    %v231 = vpack.c.b16 %v193, %v191
    %v232 = vpack.c.b16 %v196, %v194
    %v233 = vpack.c.b16 %v197, %v195
    %v234 = vpack.c.b16 %v200, %v198
    %v235 = vpack.c.b16 %v201, %v199
    %v236 = vpack.c.b16 %v204, %v202
    %v237 = vpack.c.b16 %v205, %v203
    %270 = vmatprep.subr.bf16.mxu0 %v221
    %271 = vmatpush1.bf16.msra.mxu0 %v220
    %272 = vmatprep.subr.bf16.mxu0 %v219
    %273 = vmatpush1.bf16.msra.mxu0 %v218
    %274 = vmatprep.subr.bf16.mxu0 %v217
    %275 = vmatpush1.bf16.msra.mxu0 %v216
    %276 = vmatprep.subr.bf16.mxu0 %v215
    %277 = vmatpush1.bf16.msra.mxu0 %v214
    %278 = vmatprep.subr.bf16.mxu0 %v213
    %279 = vmatpush1.bf16.msra.mxu0 %v212
    %280 = vmatprep.subr.bf16.mxu0 %v211
    %281 = vmatpush1.bf16.msra.mxu0 %v210
    %282 = vmatprep.subr.bf16.mxu0 %v209
    %283 = vmatpush1.bf16.msra.mxu0 %v208
    %284 = vmatprep.subr.bf16.mxu0 %v207
    %285 = vmatpush1.bf16.msra.mxu0 %v206
    %286 = vmatprep.subr.bf16.mxu0 %v237
    %287 = vmatpush2.bf16.msra.mxu0 %v236
    %288 = vmatprep.subr.bf16.mxu0 %v235
    %289 = vmatpush2.bf16.msra.mxu0 %v234
    %290 = vmatprep.subr.bf16.mxu0 %v233
    %291 = vmatpush2.bf16.msra.mxu0 %v232
    %292 = vmatprep.subr.bf16.mxu0 %v231
    %293 = vmatpush2.bf16.msra.mxu0 %v230
    %294 = vmatprep.subr.bf16.mxu0 %v229
    %295 = vmatpush2.bf16.msra.mxu0 %v228
    %296 = vmatprep.subr.bf16.mxu0 %v227
    %297 = vmatpush2.bf16.msra.mxu0 %v226
    %298 = vmatprep.subr.bf16.mxu0 %v225
    %299 = vmatpush2.bf16.msra.mxu0 %v224
    %300 = vmatprep.subr.bf16.mxu0 %v223
    %301 = vmatpush2.bf16.msra.mxu0 %v222
    %302 = vmatprep.mubr.bf16.mxu0 %v77
    %303 = vmatmul.mubr.bf16.gmra.mxu0 %v76
    %v304 = vpop.f32.mrf.mxu0
    %v305 = vadd.f32 0.0, %v304
    %v306 = vpop.f32.mrf.mxu0
    %v307 = vadd.f32 0.0, %v306
    %v308 = vpop.f32.mrf.mxu0
    %v309 = vpop.f32.mrf.mxu0
    %310 = vdwg.mxu0
    %v311 = vld [vmem:[%s2] sm:$0x1]
    %v313 = vlaneseq
    %v314 = vshrl.u32 %v313, 7
    %v315 = vsub.s32 0, %v314
    %v316 = vrot.slane %v311, %v315
    %v318 = vadd.f32 %v305, %v316
    %v319 = vmax.f32 %v318, 0.0
    %v320 = vpack.c.bf16 %v319, %v319
    %v321 = vld [vmem:[%s3] sm:$0xf]
    %v322 = vld [vmem:[%s3 + $0x4] sm:$0xf]
    %v323 = vld [vmem:[%s3 + $0x8] sm:$0xf]
    %v324 = vld [vmem:[%s3 + $0xc] sm:$0xf]
    %v325 = vld [vmem:[%s3 + $0x10] sm:$0xf]
    %v326 = vld [vmem:[%s3 + $0x14] sm:$0xf]
    %v327 = vld [vmem:[%s3 + $0x18] sm:$0xf]
    %v328 = vld [vmem:[%s3 + $0x1c] sm:$0xf]
    %v329 = vld [vmem:[%s3 + $0x20] sm:$0xf]
    %v330 = vld [vmem:[%s3 + $0x24] sm:$0xf]
    %v331 = vld [vmem:[%s3 + $0x28] sm:$0xf]
    %v332 = vld [vmem:[%s3 + $0x2c] sm:$0xf]
    %v333 = vld [vmem:[%s3 + $0x30] sm:$0xf]
    %v334 = vld [vmem:[%s3 + $0x34] sm:$0xf]
    %v335 = vld [vmem:[%s3 + $0x38] sm:$0xf]
    %v336 = vld [vmem:[%s3 + $0x3c] sm:$0xf]
    %v337 = vld [vmem:[%s4] sm:$0x1]
    %v339 = vlaneseq
    %v340 = vshrl.u32 %v339, 7
    %v341 = vsub.s32 0, %v340
    %v342 = vrot.slane %v337, %v341
    %v360 = vunpack.c.l.b16 %v321
    %v361 = vunpack.c.l.b16 %v322
    %v362 = vunpack.c.l.b16 %v323
    %v363 = vunpack.c.l.b16 %v324
    %v364 = vunpack.c.l.b16 %v325
    %v365 = vunpack.c.l.b16 %v326
    %v366 = vunpack.c.l.b16 %v327
    %v367 = vunpack.c.l.b16 %v328
    %v368 = vunpack.c.l.b16 %v329
    %v369 = vunpack.c.l.b16 %v330
    %v370 = vunpack.c.l.b16 %v331
    %v371 = vunpack.c.l.b16 %v332
    %v372 = vunpack.c.l.b16 %v333
    %v373 = vunpack.c.l.b16 %v334
    %v374 = vunpack.c.l.b16 %v335
    %v375 = vunpack.c.l.b16 %v336
    %v376 = vpack.c.b16 %v361, %v360
    %v377 = vpack.c.b16 %v363, %v362
    %v378 = vpack.c.b16 %v365, %v364
    %v379 = vpack.c.b16 %v367, %v366
    %v380 = vpack.c.b16 %v369, %v368
    %v381 = vpack.c.b16 %v371, %v370
    %v382 = vpack.c.b16 %v373, %v372
    %v383 = vpack.c.b16 %v375, %v374
    %392 = vmatprep.subr.bf16.mxu0 0
    %393 = vmatpush1.bf16.msra.mxu0 %v383
    %394 = vmatprep.subr.bf16.mxu0 0
    %395 = vmatpush1.bf16.msra.mxu0 %v382
    %396 = vmatprep.subr.bf16.mxu0 0
    %397 = vmatpush1.bf16.msra.mxu0 %v381
    %398 = vmatprep.subr.bf16.mxu0 0
    %399 = vmatpush1.bf16.msra.mxu0 %v380
    %400 = vmatprep.subr.bf16.mxu0 0
    %401 = vmatpush1.bf16.msra.mxu0 %v379
    %402 = vmatprep.subr.bf16.mxu0 0
    %403 = vmatpush1.bf16.msra.mxu0 %v378
    %404 = vmatprep.subr.bf16.mxu0 0
    %405 = vmatpush1.bf16.msra.mxu0 %v377
    %406 = vmatprep.subr.bf16.mxu0 0
    %407 = vmatpush1.bf16.msra.mxu0 %v376
    %408 = vmatprep.subr.bf16.mxu0 0
    %409 = vmatpush2.bf16.msra.mxu0 0
    %410 = vmatprep.subr.bf16.mxu0 0
    %411 = vmatpush2.bf16.msra.mxu0 0
    %412 = vmatprep.subr.bf16.mxu0 0
    %413 = vmatpush2.bf16.msra.mxu0 0
    %414 = vmatprep.subr.bf16.mxu0 0
    %415 = vmatpush2.bf16.msra.mxu0 0
    %416 = vmatprep.subr.bf16.mxu0 0
    %417 = vmatpush2.bf16.msra.mxu0 0
    %418 = vmatprep.subr.bf16.mxu0 0
    %419 = vmatpush2.bf16.msra.mxu0 0
    %420 = vmatprep.subr.bf16.mxu0 0
    %421 = vmatpush2.bf16.msra.mxu0 0
    %422 = vmatprep.subr.bf16.mxu0 0
    %423 = vmatpush2.bf16.msra.mxu0 0
    %424 = vmatprep.mubr.bf16.mxu0 0
    %425 = vmatmul.mubr.bf16.gmra.mxu0 %v320
    %v426 = vpop.f32.mrf.mxu0
    %v427 = vadd.f32 %v342, %v426
    %v428 = vpop.f32.mrf.mxu0
    %v429 = vpop.f32.mrf.mxu0
    %v430 = vpop.f32.mrf.mxu0
    %431 = vdwg.mxu0
    %v432 = vmax.f32 %v427, 0.0
    %v433 = vpack.c.bf16 %v432, %v432
    %v434 = vld [vmem:[#allocation4] sm:$0xf]
    %v435 = vld [vmem:[#allocation4 + $0x4] sm:$0xf]
    %v436 = vld [vmem:[#allocation4 + $0x8] sm:$0xf]
    %v437 = vld [vmem:[#allocation4 + $0xc] sm:$0xf]
    %v438 = vld [vmem:[#allocation4 + $0x10] sm:$0xf]
    %v439 = vld [vmem:[#allocation4 + $0x14] sm:$0xf]
    %v440 = vld [vmem:[#allocation4 + $0x18] sm:$0xf]
    %v441 = vld [vmem:[#allocation4 + $0x1c] sm:$0xf]
    %v442 = vld [vmem:[#allocation4 + $0x20] sm:$0xf]
    %v443 = vld [vmem:[#allocation4 + $0x24] sm:$0xf]
    %v444 = vld [vmem:[#allocation4 + $0x28] sm:$0xf]
    %v445 = vld [vmem:[#allocation4 + $0x2c] sm:$0xf]
    %v446 = vld [vmem:[#allocation4 + $0x30] sm:$0xf]
    %v447 = vld [vmem:[#allocation4 + $0x34] sm:$0xf]
    %v448 = vld [vmem:[#allocation4 + $0x38] sm:$0xf]
    %v449 = vld [vmem:[#allocation4 + $0x3c] sm:$0xf]
    %v466 = vunpack.c.l.b16 %v434
    %v467 = vunpack.c.l.b16 %v435
    %v468 = vunpack.c.l.b16 %v436
    %v469 = vunpack.c.l.b16 %v437
    %v470 = vunpack.c.l.b16 %v438
    %v471 = vunpack.c.l.b16 %v439
    %v472 = vunpack.c.l.b16 %v440
    %v473 = vunpack.c.l.b16 %v441
    %v474 = vunpack.c.l.b16 %v442
    %v475 = vunpack.c.l.b16 %v443
    %v476 = vunpack.c.l.b16 %v444
    %v477 = vunpack.c.l.b16 %v445
    %v478 = vunpack.c.l.b16 %v446
    %v479 = vunpack.c.l.b16 %v447
    %v480 = vunpack.c.l.b16 %v448
    %v481 = vunpack.c.l.b16 %v449
    %v482 = vpack.c.b16 %v467, %v466
    %v483 = vpack.c.b16 %v469, %v468
    %v484 = vpack.c.b16 %v471, %v470
    %v485 = vpack.c.b16 %v473, %v472
    %v486 = vpack.c.b16 %v475, %v474
    %v487 = vpack.c.b16 %v477, %v476
    %v488 = vpack.c.b16 %v479, %v478
    %v489 = vpack.c.b16 %v481, %v480
    %498 = vmatprep.subr.bf16.mxu0 0
    %499 = vmatpush1.bf16.msra.mxu0 %v489
    %500 = vmatprep.subr.bf16.mxu0 0
    %501 = vmatpush1.bf16.msra.mxu0 %v488
    %502 = vmatprep.subr.bf16.mxu0 0
    %503 = vmatpush1.bf16.msra.mxu0 %v487
    %504 = vmatprep.subr.bf16.mxu0 0
    %505 = vmatpush1.bf16.msra.mxu0 %v486
    %506 = vmatprep.subr.bf16.mxu0 0
    %507 = vmatpush1.bf16.msra.mxu0 %v485
    %508 = vmatprep.subr.bf16.mxu0 0
    %509 = vmatpush1.bf16.msra.mxu0 %v484
    %510 = vmatprep.subr.bf16.mxu0 0
    %511 = vmatpush1.bf16.msra.mxu0 %v483
    %512 = vmatprep.subr.bf16.mxu0 0
    %513 = vmatpush1.bf16.msra.mxu0 %v482
    %514 = vmatprep.subr.bf16.mxu0 0
    %515 = vmatpush2.bf16.msra.mxu0 0
    %516 = vmatprep.subr.bf16.mxu0 0
    %517 = vmatpush2.bf16.msra.mxu0 0
    %518 = vmatprep.subr.bf16.mxu0 0
    %519 = vmatpush2.bf16.msra.mxu0 0
    %520 = vmatprep.subr.bf16.mxu0 0
    %521 = vmatpush2.bf16.msra.mxu0 0
    %522 = vmatprep.subr.bf16.mxu0 0
    %523 = vmatpush2.bf16.msra.mxu0 0
    %524 = vmatprep.subr.bf16.mxu0 0
    %525 = vmatpush2.bf16.msra.mxu0 0
    %526 = vmatprep.subr.bf16.mxu0 0
    %527 = vmatpush2.bf16.msra.mxu0 0
    %528 = vmatprep.subr.bf16.mxu0 0
    %529 = vmatpush2.bf16.msra.mxu0 0
    %530 = vmatprep.mubr.bf16.mxu0 0
    %531 = vmatmul.mubr.bf16.gmra.mxu0 %v433
    %v532 = vpop.f32.mrf.mxu0
    %v533 = vadd.f32 %v307, %v532
    %v534 = vpop.f32.mrf.mxu0
    %v535 = vpop.f32.mrf.mxu0
    %v536 = vpop.f32.mrf.mxu0
    %537 = vdwg.mxu0
    %v538 = vld [vmem:[%s6] sm:$0x1]
    %v540 = vlaneseq
    %v541 = vshrl.u32 %v540, 7
    %v542 = vsub.s32 0, %v541
    %v543 = vrot.slane %v538, %v542
    %v545 = vadd.f32 %v533, %v543
    %v546 = vmax.f32 %v545, 0.0
    %v547 = vpack.c.bf16 %v546, %v546
    %v548 = vld [vmem:[#allocation6] sm:$0xf]
    %v549 = vld [vmem:[#allocation6 + $0x4] sm:$0xf]
    %v550 = vld [vmem:[#allocation6 + $0x8] sm:$0xf]
    %v551 = vld [vmem:[#allocation6 + $0xc] sm:$0xf]
    %v552 = vld [vmem:[#allocation6 + $0x10] sm:$0xf]
    %v553 = vld [vmem:[#allocation6 + $0x14] sm:$0xf]
    %v554 = vld [vmem:[#allocation6 + $0x18] sm:$0xf]
    %v555 = vld [vmem:[#allocation6 + $0x1c] sm:$0xf]
    %v556 = vld [vmem:[#allocation6 + $0x20] sm:$0xf]
    %v557 = vld [vmem:[#allocation6 + $0x24] sm:$0xf]
    %v558 = vld [vmem:[#allocation6 + $0x28] sm:$0xf]
    %v559 = vld [vmem:[#allocation6 + $0x2c] sm:$0xf]
    %v560 = vld [vmem:[#allocation6 + $0x30] sm:$0xf]
    %v561 = vld [vmem:[#allocation6 + $0x34] sm:$0xf]
    %v562 = vld [vmem:[#allocation6 + $0x38] sm:$0xf]
    %v563 = vld [vmem:[#allocation6 + $0x3c] sm:$0xf]
    %v564 = vld [vmem:[%s8] sm:$0x1]
    %v566 = vlaneseq
    %v567 = vshrl.u32 %v566, 7
    %v568 = vsub.s32 0, %v567
    %v569 = vrot.slane %v564, %v568
    %v587 = vunpack.c.l.b16 %v548
    %v588 = vunpack.c.l.b16 %v549
    %v589 = vunpack.c.l.b16 %v550
    %v590 = vunpack.c.l.b16 %v551
    %v591 = vunpack.c.l.b16 %v552
    %v592 = vunpack.c.l.b16 %v553
    %v593 = vunpack.c.l.b16 %v554
    %v594 = vunpack.c.l.b16 %v555
    %v595 = vunpack.c.l.b16 %v556
    %v596 = vunpack.c.l.b16 %v557
    %v597 = vunpack.c.l.b16 %v558
    %v598 = vunpack.c.l.b16 %v559
    %v599 = vunpack.c.l.b16 %v560
    %v600 = vunpack.c.l.b16 %v561
    %v601 = vunpack.c.l.b16 %v562
    %v602 = vunpack.c.l.b16 %v563
    %v603 = vpack.c.b16 %v588, %v587
    %v604 = vpack.c.b16 %v590, %v589
    %v605 = vpack.c.b16 %v592, %v591
    %v606 = vpack.c.b16 %v594, %v593
    %v607 = vpack.c.b16 %v596, %v595
    %v608 = vpack.c.b16 %v598, %v597
    %v609 = vpack.c.b16 %v600, %v599
    %v610 = vpack.c.b16 %v602, %v601
    %619 = vmatprep.subr.bf16.mxu0 0
    %620 = vmatpush1.bf16.msra.mxu0 %v610
    %621 = vmatprep.subr.bf16.mxu0 0
    %622 = vmatpush1.bf16.msra.mxu0 %v609
    %623 = vmatprep.subr.bf16.mxu0 0
    %624 = vmatpush1.bf16.msra.mxu0 %v608
    %625 = vmatprep.subr.bf16.mxu0 0
    %626 = vmatpush1.bf16.msra.mxu0 %v607
    %627 = vmatprep.subr.bf16.mxu0 0
    %628 = vmatpush1.bf16.msra.mxu0 %v606
    %629 = vmatprep.subr.bf16.mxu0 0
    %630 = vmatpush1.bf16.msra.mxu0 %v605
    %631 = vmatprep.subr.bf16.mxu0 0
    %632 = vmatpush1.bf16.msra.mxu0 %v604
    %633 = vmatprep.subr.bf16.mxu0 0
    %634 = vmatpush1.bf16.msra.mxu0 %v603
    %635 = vmatprep.subr.bf16.mxu0 0
    %636 = vmatpush2.bf16.msra.mxu0 0
    %637 = vmatprep.subr.bf16.mxu0 0
    %638 = vmatpush2.bf16.msra.mxu0 0
    %639 = vmatprep.subr.bf16.mxu0 0
    %640 = vmatpush2.bf16.msra.mxu0 0
    %641 = vmatprep.subr.bf16.mxu0 0
    %642 = vmatpush2.bf16.msra.mxu0 0
    %643 = vmatprep.subr.bf16.mxu0 0
    %644 = vmatpush2.bf16.msra.mxu0 0
    %645 = vmatprep.subr.bf16.mxu0 0
    %646 = vmatpush2.bf16.msra.mxu0 0
    %647 = vmatprep.subr.bf16.mxu0 0
    %648 = vmatpush2.bf16.msra.mxu0 0
    %649 = vmatprep.subr.bf16.mxu0 0
    %650 = vmatpush2.bf16.msra.mxu0 0
    %651 = vmatprep.mubr.bf16.mxu0 0
    %652 = vmatmul.mubr.bf16.gmra.mxu0 %v547
    %v653 = vpop.f32.mrf.mxu0
    %v654 = vadd.f32 %v569, %v653
    %v655 = vpop.f32.mrf.mxu0
    %v656 = vpop.f32.mrf.mxu0
    %v657 = vpop.f32.mrf.mxu0
    %658 = vdwg.mxu0
    %659 = vst [vmem:[%s9] sm:$0xff] %v654
    // Predicated region
    $region50: #{_forward_impl.1} parent=1 // pred_check
      _
    $region51: #{_forward_impl.1} parent=1 // pred_check_branch
      %661 = sbr.rel (0) target = $region53
    $region52: #{_forward_impl.1} parent=1 // pred_region
      _
    $region53: #{_forward_impl.1} parent=1 // pred_fallthru
      _
    // Predicated region
    $region54: #{_forward_impl.1} parent=1 // pred_check
      _
    $region55: #{_forward_impl.1} parent=1 // pred_check_branch
      %663 = sbr.rel (0) target = $region57
    $region56: #{_forward_impl.1} parent=1 // pred_region
      _
    $region57: #{_forward_impl.1} parent=1 // pred_fallthru
      _
    %664 = vsyncpa [#allocation3], 1
    %665 = vsyncpa [#allocation5], 1

</llo_original>
